<compile_context>
chip_gen: v7x
topology: tpu7x:2x2x1
jax: 0.10.0
libtpu: 0.0.40
codegen_flags: <defaults>
</compile_context>

<pallas_src>
import math

import jax
import jax.numpy as jnp
import numpy as np
from jax.experimental import pallas as pl
from jax.experimental.pallas import tpu as pltpu


_TARGET_BLOCK_BYTES = 2 * 1024 * 1024   # ~2 MiB per x block
_VMEM_LIMIT = 32 * 1024 * 1024          # <= default scoped VMEM on v5e/v6e/v7x
_MIN_PALLAS_ELEMS = 1024                # below this a kernel launch costs more than it saves


def _choose_tile_rows(rows, max_rows):
    """Row tile that divides `rows`, is <= max_rows, and (when a proper
    sub-block) is a multiple of 8 so the (8, 128) tiling constraint holds."""
    if rows <= max_rows:
        return rows
    start = (max_rows // 8) * 8
    for d in range(start, 0, -8):
        if rows % d == 0:
            return d
    # TODO(synk): no 8-aligned divisor <= max_rows; fall back to one big block.
    return rows


def _make_stats_kernel(acc_rows):
    def stats_kernel(x_ref, t_ref, m_ref, o_ref):
        # o_ref (5, acc_rows, 128) is the resident per-sample accumulator: its
        # block index depends only on the sample grid axis, so it stays in VMEM
        # across the row-tile reduction axis.
        @pl.when(pl.program_id(1) == 0)
        def _init():
            o_ref[...] = jnp.zeros_like(o_ref)

        x = x_ref[...].astype(jnp.float32)        # (C, tile_rows, 128)
        t = t_ref[...].astype(jnp.float32)
        m = m_ref[...].astype(jnp.float32)        # (tile_rows, 128)

        diff = x - t                              # unclamped error (mse_loss)
        cd = jnp.clip(x, 0.0, 1.0) - t            # clamped error (psnr / roi)
        rm = cd * m[None]                         # cd * mask (broadcast over C)
        nm = cd - rm                              # cd * (1 - mask) (soft-mask safe)

        def fold(v):                              # (..., k*acc_rows, 128) -> (acc_rows, 128)
            v = v.reshape(-1, acc_rows, 128)      # pure sublane regrouping, no data movement
            if v.shape[0] == 1:
                return v[0]
            return jnp.sum(v, axis=0)             # VPU plane adds only

        o_ref[0] += fold(diff * diff)             # sum (x - t)^2
        o_ref[1] += fold(cd * cd)                 # sum (clamp(x) - t)^2
        o_ref[2] += fold(rm * rm)                 # sum ((clamp(x)-t) * m)^2
        o_ref[3] += fold(nm * nm)                 # sum ((clamp(x)-t) * (1-m))^2
        o_ref[4] += fold(m)                       # sum m (once per tile; x C in glue)

    return stats_kernel


def _make_logsum_kernel(acc_rows):
    def logsum_kernel(l_ref, o_ref):
        @pl.when(pl.program_id(1) == 0)
        def _init():
            o_ref[...] = jnp.zeros_like(o_ref)
        v = jnp.log(l_ref[...].astype(jnp.float32))          # EUP slot
        v = v.reshape(-1, acc_rows, 128)
        if v.shape[0] > 1:
            v = jnp.sum(v, axis=0)
        else:
            v = v[0]
        o_ref[...] += v
    return logsum_kernel


def _per_sample_log_sum(lh):
    """Per-sample sum of log(likelihoods)."""
    n = lh.shape[0]
    flat = lh.reshape(n, -1)
    per = flat.shape[1]
    if per < _MIN_PALLAS_ELEMS or per % 128 != 0:
        # Tiny / oddly-shaped likelihood tensors: plain JAX beats a kernel launch.
        return jnp.sum(jnp.log(flat.astype(jnp.float32)), axis=-1)

    rows = per // 128
    max_rows = max(8, (_TARGET_BLOCK_BYTES // (128 * 4)) // 8 * 8)
    tile_rows = _choose_tile_rows(rows, max_rows)
    n_row_blocks = rows // tile_rows
    acc_rows = 8 if tile_rows % 8 == 0 else tile_rows
    x3 = flat.reshape(n, rows, 128)

    out = pl.pallas_call(
        _make_logsum_kernel(acc_rows),
        out_shape=jax.ShapeDtypeStruct((n, acc_rows, 128), jnp.float32),
        grid=(n, n_row_blocks),
        in_specs=[pl.BlockSpec((None, tile_rows, 128), lambda i, k: (i, k, 0))],
        out_specs=pl.BlockSpec((None, acc_rows, 128), lambda i, k: (i, 0, 0)),
        compiler_params=pltpu.CompilerParams(
            dimension_semantics=("parallel", "arbitrary"),
            vmem_limit_bytes=_VMEM_LIMIT),
        cost_estimate=pl.CostEstimate(
            flops=int(flat.size), transcendentals=int(flat.size),
            bytes_accessed=int(flat.size * flat.dtype.itemsize
                               + n * acc_rows * 128 * 4)),
    )(x3)
    return out.sum(axis=(1, 2))


def metrics_forward(x_hat, target, likelihoods, mask):
    """JAX/Pallas equivalent of Metrics.forward(output, target, mask)."""
    N, C, H, W = target.shape
    P = H * W
    D = C * P
    num_pixels = P

    if mask.dtype == jnp.bool_:
        mask = mask.astype(jnp.float32)

    # Flatten NCHW -> (N, C, P) / (N, P); zero-pad the pixel axis up to a
    # multiple of 128 lanes (zero pads contribute 0 to every accumulated sum).
    p_pad = -(-P // 128) * 128
    xr = x_hat.reshape(N, C, P)
    tg = target.reshape(N, C, P)
    mr = mask.reshape(N, P)
    if p_pad != P:
        xr = jnp.pad(xr, ((0, 0), (0, 0), (0, p_pad - P)))
        tg = jnp.pad(tg, ((0, 0), (0, 0), (0, p_pad - P)))
        mr = jnp.pad(mr, ((0, 0), (0, p_pad - P)))

    rows = p_pad // 128
    max_rows = max(8, (_TARGET_BLOCK_BYTES // (C * 128 * 4)) // 8 * 8)
    tile_rows = _choose_tile_rows(rows, max_rows)
    n_row_blocks = rows // tile_rows
    acc_rows = 8 if tile_rows % 8 == 0 else tile_rows

    x4 = xr.reshape(N, C, rows, 128)
    t4 = tg.reshape(N, C, rows, 128)
    m3 = mr.reshape(N, rows, 128)

    bytes_accessed = int(x4.size * x4.dtype.itemsize
                         + t4.size * t4.dtype.itemsize
                         + m3.size * m3.dtype.itemsize
                         + N * 5 * acc_rows * 128 * 4)

    stats = pl.pallas_call(
        _make_stats_kernel(acc_rows),
        out_shape=jax.ShapeDtypeStruct((N, 5, acc_rows, 128), jnp.float32),
        # Channels are folded into the block: one step per (sample, row tile),
        # so the accumulator is touched once per tile and the mask tile is
        # loaded once per tile instead of once per channel.
        grid=(N, n_row_blocks),
        in_specs=[
            pl.BlockSpec((None, C, tile_rows, 128), lambda i, k: (i, 0, k, 0)),
            pl.BlockSpec((None, C, tile_rows, 128), lambda i, k: (i, 0, k, 0)),
            pl.BlockSpec((None, tile_rows, 128), lambda i, k: (i, k, 0)),
        ],
        out_specs=pl.BlockSpec((None, 5, acc_rows, 128), lambda i, k: (i, 0, 0, 0)),
        compiler_params=pltpu.CompilerParams(
            dimension_semantics=("parallel", "arbitrary"),
            vmem_limit_bytes=_VMEM_LIMIT),
        cost_estimate=pl.CostEstimate(flops=14 * int(x4.size), transcendentals=0,
                                      bytes_accessed=bytes_accessed),
    )(x4, t4, m3)

    sums = stats.sum(axis=(2, 3))               # (N, 5): lane reduction once, in glue
    sq = sums[:, 0]
    csq = sums[:, 1]
    roi_sq = sums[:, 2]
    nroi_sq = sums[:, 3]
    m_pix = sums[:, 4]                          # per-sample sum over mask (pixels)
    m_sum = C * m_pix                           # == sum over channel-repeated mask
    nm_sum = D - m_sum                          # == sum over (1 - mask3), any mask

    out = {}

    # bpp_loss: per-likelihood per-sample sum(log) / (-log(2) * num_pixels)
    ln2 = math.log(2.0)
    bpp_terms = [_per_sample_log_sum(lh) / (-ln2 * num_pixels)
                 for lh in likelihoods.values()]
    out['bpp_loss'] = jnp.stack(bpp_terms).sum(0)                  # (N,)

    out['mse_loss'] = jnp.sum(sq) / (N * D)                        # scalar

    total_roi = jnp.sum(roi_sq)
    total_m = jnp.sum(m_sum)
    total_nroi = jnp.sum(nroi_sq)
    total_nm = jnp.sum(nm_sum)

    out['roi_psnr'] = 10.0 * jnp.log10(1.0 / (total_roi / total_m))
    out['roi_mse'] = total_roi / (N * D)
    out['nroi_psnr'] = 10.0 * jnp.log10(1.0 / (total_nroi / total_nm))
    out['nroi_mse'] = total_nroi / (N * D)
    out['roi_psnr_ind'] = 10.0 * jnp.log10(1.0 / (roi_sq / m_sum))     # (N,)
    out['nroi_psnr_ind'] = 10.0 * jnp.log10(1.0 / (nroi_sq / nm_sum))  # (N,)

    out['psnr'] = 10.0 * jnp.log10(1.0 / (csq / D))                    # (N,)

    mask_sum = jnp.sum(m_pix)                   # == original mask.sum()
    nmask_sum = N * num_pixels - mask_sum       # == (1 - mask).sum()
    out['weighted_PSNR'] = 10.0 * jnp.log10(
        1.0 / ((0.8 * out['roi_mse'] * num_pixels * 3
                + 0.2 * out['nroi_mse'] * num_pixels * 3)
               / (0.8 * mask_sum * 3 + 0.2 * nmask_sum * 3)))
    return out


# -------------------------- pure-JAX reference ----------------------------- #

def metrics_reference(x_hat, target, likelihoods, mask):
    N, C, H, W = target.shape
    num_pixels = H * W
    out = {}
    bpp = jnp.stack([jnp.sum(jnp.log(lh).reshape(N, -1), axis=-1)
                     / (-math.log(2.0) * num_pixels)
                     for lh in likelihoods.values()]).sum(0)
    out['bpp_loss'] = bpp
    out['mse_loss'] = jnp.mean((x_hat - target) ** 2)
    mask3 = jnp.tile(mask, (1, C, 1, 1))
    cdiff = jnp.clip(x_hat, 0.0, 1.0) - target
    out['roi_psnr'] = 10.0 * jnp.log10(
        1.0 / (jnp.sum((cdiff * mask3) ** 2) / jnp.sum(mask3)))
    out['roi_mse'] = jnp.mean((cdiff * mask3) ** 2)
    out['nroi_psnr'] = 10.0 * jnp.log10(
        1.0 / (jnp.sum((cdiff * (1 - mask3)) ** 2) / jnp.sum(1 - mask3)))
    out['nroi_mse'] = jnp.mean((cdiff * (1 - mask3)) ** 2)
    out['roi_psnr_ind'] = 10.0 * jnp.log10(
        1.0 / (jnp.sum((cdiff * mask3) ** 2, axis=(1, 2, 3))
               / jnp.sum(mask3, axis=(1, 2, 3))))
    out['nroi_psnr_ind'] = 10.0 * jnp.log10(
        1.0 / (jnp.sum((cdiff * (1 - mask3)) ** 2, axis=(1, 2, 3))
               / jnp.sum(1 - mask3, axis=(1, 2, 3))))
    out['psnr'] = 10.0 * jnp.log10(1.0 / jnp.mean(cdiff ** 2, axis=(1, 2, 3)))
    out['weighted_PSNR'] = 10.0 * jnp.log10(
        1.0 / ((0.8 * out['roi_mse'] * num_pixels * 3
                + 0.2 * out['nroi_mse'] * num_pixels * 3)
               / (0.8 * jnp.sum(mask) * 3 + 0.2 * jnp.sum(1 - mask) * 3)))
    return out


# --------------------------------- main ------------------------------------ #

if __name__ == "__main__":
    key = jax.random.PRNGKey(0)
    k1, k2, k3, k4, k5 = jax.random.split(key, 5)

    N, C, H, W = 2, 3, 16, 16

    x_hat = jax.random.uniform(k1, (N, C, H, W), jnp.float32, -0.1, 1.1)
    target = jax.random.uniform(k2, (N, C, H, W), jnp.float32, 0.0, 1.0)
    mask = (jax.random.uniform(k3, (N, 1, H, W), jnp.float32) > 0.5
            ).astype(jnp.float32)
    likelihoods = {
        # 'y' (8192 elems/sample) exercises the tiled Pallas log-sum path,
        # 'z' is tiny and stays in plain JAX.
        'y': jax.random.uniform(k4, (N, 32, H, W), jnp.float32, 0.01, 1.0),
        'z': jax.random.uniform(k5, (N, 4, 1, 1), jnp.float32, 0.01, 1.0),
    }

    out = metrics_forward(x_hat, target, likelihoods, mask)
    out = jax.tree_util.tree_map(jax.block_until_ready, out)

    ref = metrics_reference(x_hat, target, likelihoods, mask)
    for k in ref:
        np.testing.assert_allclose(np.asarray(out[k]), np.asarray(ref[k]),
                                   rtol=1e-4, atol=1e-4)

    print("KERNEL_OK")
</pallas_src>

<mosaic_0001>
module attributes {stable_mosaic.version = 11 : i64} {
  func.func @stats_kernel(%arg0: i32, %arg1: i32, %arg2: memref<1x3x2x128xf32, #tpu.memory_space<vmem>>, %arg3: memref<1x3x2x128xf32, #tpu.memory_space<vmem>>, %arg4: memref<1x2x128xf32, #tpu.memory_space<vmem>>, %arg5: memref<1x5x2x128xf32, #tpu.memory_space<vmem>>) attributes {dimension_semantics = [#tpu.dimension_semantics<parallel>, #tpu.dimension_semantics<arbitrary>], iteration_bounds = array<i64: 2, 1>, scalar_prefetch = 0 : i64, scratch_operands = 0 : i64, tpu.core_type = #tpu.core_type<tc>, window_params = [{transform_indices = @transform_0, window_bounds = array<i64: 1, 3, 2, 128>}, {transform_indices = @transform_1, window_bounds = array<i64: 1, 3, 2, 128>}, {transform_indices = @transform_2, window_bounds = array<i64: 1, 2, 128>}, {transform_indices = @transform_3, window_bounds = array<i64: 1, 5, 2, 128>}]} {
    %c0_i32 = arith.constant 0 : i32
    %0 = arith.cmpi eq, %arg1, %c0_i32 : i32
    %1 = arith.extui %0 : i1 to i32
    %c0_i32_0 = arith.constant 0 : i32
    %2 = arith.cmpi ne, %1, %c0_i32_0 : i32
    scf.if %2 {
      %cst_52 = arith.constant 0.000000e+00 : f32
      %59 = vector.broadcast %cst_52 : f32 to vector<5x2x128xf32>
      %c0_53 = arith.constant 0 : index
      %c0_54 = arith.constant 0 : index
      %c0_55 = arith.constant 0 : index
      %c0_56 = arith.constant 0 : index
      %60 = vector.load %arg5[%c0_53, %c0_54, %c0_55, %c0_56] : memref<1x5x2x128xf32, #tpu.memory_space<vmem>>, vector<1x5x2x128xf32>
      %61 = vector.shape_cast %60 : vector<1x5x2x128xf32> to vector<5x2x128xf32>
      %62 = vector.shape_cast %59 : vector<5x2x128xf32> to vector<1x5x2x128xf32>
      tpu.vector_store %arg5[%c0_53, %c0_54, %c0_55, %c0_56], %62 {strides = array<i32>} : memref<1x5x2x128xf32, #tpu.memory_space<vmem>>, vector<1x5x2x128xf32>,
    } else {
    }
    %c0 = arith.constant 0 : index
    %c0_1 = arith.constant 0 : index
    %c0_2 = arith.constant 0 : index
    %c0_3 = arith.constant 0 : index
    %3 = vector.load %arg2[%c0, %c0_1, %c0_2, %c0_3] : memref<1x3x2x128xf32, #tpu.memory_space<vmem>>, vector<1x3x2x128xf32>
    %4 = vector.shape_cast %3 : vector<1x3x2x128xf32> to vector<3x2x128xf32>
    %c0_4 = arith.constant 0 : index
    %c0_5 = arith.constant 0 : index
    %c0_6 = arith.constant 0 : index
    %c0_7 = arith.constant 0 : index
    %5 = vector.load %arg3[%c0_4, %c0_5, %c0_6, %c0_7] : memref<1x3x2x128xf32, #tpu.memory_space<vmem>>, vector<1x3x2x128xf32>
    %6 = vector.shape_cast %5 : vector<1x3x2x128xf32> to vector<3x2x128xf32>
    %c0_8 = arith.constant 0 : index
    %c0_9 = arith.constant 0 : index
    %c0_10 = arith.constant 0 : index
    %7 = vector.load %arg4[%c0_8, %c0_9, %c0_10] : memref<1x2x128xf32, #tpu.memory_space<vmem>>, vector<1x2x128xf32>
    %8 = vector.shape_cast %7 : vector<1x2x128xf32> to vector<2x128xf32>
    %9 = arith.subf %4, %6 : vector<3x2x128xf32>
    %cst = arith.constant 0.000000e+00 : f32
    %cst_11 = arith.constant 1.000000e+00 : f32
    %10 = vector.broadcast %cst : f32 to vector<3x2x128xf32>
    %11 = arith.maximumf %10, %4 : vector<3x2x128xf32>
    %12 = vector.broadcast %cst_11 : f32 to vector<3x2x128xf32>
    %13 = arith.minimumf %12, %11 : vector<3x2x128xf32>
    %14 = arith.subf %13, %6 : vector<3x2x128xf32>
    %15 = vector.shape_cast %8 : vector<2x128xf32> to vector<1x2x128xf32>
    %16 = vector.broadcast %15 : vector<1x2x128xf32> to vector<3x2x128xf32>
    %17 = arith.mulf %14, %16 : vector<3x2x128xf32>
    %18 = arith.subf %14, %17 : vector<3x2x128xf32>
    %c0_12 = arith.constant 0 : index
    %c0_13 = arith.constant 0 : index
    %c0_14 = arith.constant 0 : index
    %c0_15 = arith.constant 0 : index
    %19 = vector.load %arg5[%c0_12, %c0_13, %c0_14, %c0_15] : memref<1x5x2x128xf32, #tpu.memory_space<vmem>>, vector<1x1x2x128xf32>
    %20 = vector.shape_cast %19 : vector<1x1x2x128xf32> to vector<2x128xf32>
    %21 = arith.mulf %9, %9 : vector<3x2x128xf32>
    %cst_16 = arith.constant dense<0.000000e+00> : vector<2x128xf32>
    %22 = vector.multi_reduction <add>, %21, %cst_16 [0] : vector<3x2x128xf32> to vector<2x128xf32>
    %23 = arith.addf %20, %22 : vector<2x128xf32>
    %c0_17 = arith.constant 0 : index
    %c0_18 = arith.constant 0 : index
    %c0_19 = arith.constant 0 : index
    %c0_20 = arith.constant 0 : index
    %24 = vector.load %arg5[%c0_17, %c0_18, %c0_19, %c0_20] : memref<1x5x2x128xf32, #tpu.memory_space<vmem>>, vector<1x1x2x128xf32>
    %25 = vector.shape_cast %24 : vector<1x1x2x128xf32> to vector<2x128xf32>
    %26 = vector.shape_cast %23 : vector<2x128xf32> to vector<1x1x2x128xf32>
    tpu.vector_store %arg5[%c0_17, %c0_18, %c0_19, %c0_20], %26 {strides = array<i32>} : memref<1x5x2x128xf32, #tpu.memory_space<vmem>>, vector<1x1x2x128xf32>,
    %c0_21 = arith.constant 0 : index
    %c1 = arith.constant 1 : index
    %c0_22 = arith.constant 0 : index
    %c0_23 = arith.constant 0 : index
    %27 = vector.load %arg5[%c0_21, %c1, %c0_22, %c0_23] : memref<1x5x2x128xf32, #tpu.memory_space<vmem>>, vector<1x1x2x128xf32>
    %28 = vector.shape_cast %27 : vector<1x1x2x128xf32> to vector<2x128xf32>
    %29 = arith.mulf %14, %14 : vector<3x2x128xf32>
    %cst_24 = arith.constant dense<0.000000e+00> : vector<2x128xf32>
    %30 = vector.multi_reduction <add>, %29, %cst_24 [0] : vector<3x2x128xf32> to vector<2x128xf32>
    %31 = arith.addf %28, %30 : vector<2x128xf32>
    %c0_25 = arith.constant 0 : index
    %c1_26 = arith.constant 1 : index
    %c0_27 = arith.constant 0 : index
    %c0_28 = arith.constant 0 : index
    %32 = vector.load %arg5[%c0_25, %c1_26, %c0_27, %c0_28] : memref<1x5x2x128xf32, #tpu.memory_space<vmem>>, vector<1x1x2x128xf32>
    %33 = vector.shape_cast %32 : vector<1x1x2x128xf32> to vector<2x128xf32>
    %34 = vector.shape_cast %31 : vector<2x128xf32> to vector<1x1x2x128xf32>
    tpu.vector_store %arg5[%c0_25, %c1_26, %c0_27, %c0_28], %34 {strides = array<i32>} : memref<1x5x2x128xf32, #tpu.memory_space<vmem>>, vector<1x1x2x128xf32>,
    %c0_29 = arith.constant 0 : index
    %c2 = arith.constant 2 : index
    %c0_30 = arith.constant 0 : index
    %c0_31 = arith.constant 0 : index
    %35 = vector.load %arg5[%c0_29, %c2, %c0_30, %c0_31] : memref<1x5x2x128xf32, #tpu.memory_space<vmem>>, vector<1x1x2x128xf32>
    %36 = vector.shape_cast %35 : vector<1x1x2x128xf32> to vector<2x128xf32>
    %37 = arith.mulf %17, %17 : vector<3x2x128xf32>
    %cst_32 = arith.constant dense<0.000000e+00> : vector<2x128xf32>
    %38 = vector.multi_reduction <add>, %37, %cst_32 [0] : vector<3x2x128xf32> to vector<2x128xf32>
    %39 = arith.addf %36, %38 : vector<2x128xf32>
    %c0_33 = arith.constant 0 : index
    %c2_34 = arith.constant 2 : index
    %c0_35 = arith.constant 0 : index
    %c0_36 = arith.constant 0 : index
    %40 = vector.load %arg5[%c0_33, %c2_34, %c0_35, %c0_36] : memref<1x5x2x128xf32, #tpu.memory_space<vmem>>, vector<1x1x2x128xf32>
    %41 = vector.shape_cast %40 : vector<1x1x2x128xf32> to vector<2x128xf32>
    %42 = vector.shape_cast %39 : vector<2x128xf32> to vector<1x1x2x128xf32>
    tpu.vector_store %arg5[%c0_33, %c2_34, %c0_35, %c0_36], %42 {strides = array<i32>} : memref<1x5x2x128xf32, #tpu.memory_space<vmem>>, vector<1x1x2x128xf32>,
    %c0_37 = arith.constant 0 : index
    %c3 = arith.constant 3 : index
    %c0_38 = arith.constant 0 : index
    %c0_39 = arith.constant 0 : index
    %43 = vector.load %arg5[%c0_37, %c3, %c0_38, %c0_39] : memref<1x5x2x128xf32, #tpu.memory_space<vmem>>, vector<1x1x2x128xf32>
    %44 = vector.shape_cast %43 : vector<1x1x2x128xf32> to vector<2x128xf32>
    %45 = arith.mulf %18, %18 : vector<3x2x128xf32>
    %cst_40 = arith.constant dense<0.000000e+00> : vector<2x128xf32>
    %46 = vector.multi_reduction <add>, %45, %cst_40 [0] : vector<3x2x128xf32> to vector<2x128xf32>
    %47 = arith.addf %44, %46 : vector<2x128xf32>
    %c0_41 = arith.constant 0 : index
    %c3_42 = arith.constant 3 : index
    %c0_43 = arith.constant 0 : index
    %c0_44 = arith.constant 0 : index
    %48 = vector.load %arg5[%c0_41, %c3_42, %c0_43, %c0_44] : memref<1x5x2x128xf32, #tpu.memory_space<vmem>>, vector<1x1x2x128xf32>
    %49 = vector.shape_cast %48 : vector<1x1x2x128xf32> to vector<2x128xf32>
    %50 = vector.shape_cast %47 : vector<2x128xf32> to vector<1x1x2x128xf32>
    tpu.vector_store %arg5[%c0_41, %c3_42, %c0_43, %c0_44], %50 {strides = array<i32>} : memref<1x5x2x128xf32, #tpu.memory_space<vmem>>, vector<1x1x2x128xf32>,
    %c0_45 = arith.constant 0 : index
    %c4 = arith.constant 4 : index
    %c0_46 = arith.constant 0 : index
    %c0_47 = arith.constant 0 : index
    %51 = vector.load %arg5[%c0_45, %c4, %c0_46, %c0_47] : memref<1x5x2x128xf32, #tpu.memory_space<vmem>>, vector<1x1x2x128xf32>
    %52 = vector.shape_cast %51 : vector<1x1x2x128xf32> to vector<2x128xf32>
    %53 = vector.shape_cast %8 : vector<2x128xf32> to vector<1x2x128xf32>
    %54 = vector.shape_cast %53 : vector<1x2x128xf32> to vector<2x128xf32>
    %55 = arith.addf %52, %54 : vector<2x128xf32>
    %c0_48 = arith.constant 0 : index
    %c4_49 = arith.constant 4 : index
    %c0_50 = arith.constant 0 : index
    %c0_51 = arith.constant 0 : index
    %56 = vector.load %arg5[%c0_48, %c4_49, %c0_50, %c0_51] : memref<1x5x2x128xf32, #tpu.memory_space<vmem>>, vector<1x1x2x128xf32>
    %57 = vector.shape_cast %56 : vector<1x1x2x128xf32> to vector<2x128xf32>
    %58 = vector.shape_cast %55 : vector<2x128xf32> to vector<1x1x2x128xf32>
    tpu.vector_store %arg5[%c0_48, %c4_49, %c0_50, %c0_51], %58 {strides = array<i32>} : memref<1x5x2x128xf32, #tpu.memory_space<vmem>>, vector<1x1x2x128xf32>,
    return
  }
  func.func @transform_0(%arg0: i32, %arg1: i32) -> (i32, i32, i32, i32) {
    %c0_i32 = arith.constant 0 : i32
    %c0_i32_0 = arith.constant 0 : i32
    %c0_i32_1 = arith.constant 0 : i32
    return %arg0, %c0_i32, %arg1, %c0_i32_0 : i32, i32, i32, i32
  }
  func.func @transform_1(%arg0: i32, %arg1: i32) -> (i32, i32, i32, i32) {
    %c0_i32 = arith.constant 0 : i32
    %c0_i32_0 = arith.constant 0 : i32
    %c0_i32_1 = arith.constant 0 : i32
    return %arg0, %c0_i32, %arg1, %c0_i32_0 : i32, i32, i32, i32
  }
  func.func @transform_2(%arg0: i32, %arg1: i32) -> (i32, i32, i32) {
    %c0_i32 = arith.constant 0 : i32
    %c0_i32_0 = arith.constant 0 : i32
    return %arg0, %arg1, %c0_i32 : i32, i32, i32
  }
  func.func @transform_3(%arg0: i32, %arg1: i32) -> (i32, i32, i32, i32) {
    %c0_i32 = arith.constant 0 : i32
    %c0_i32_0 = arith.constant 0 : i32
    %c0_i32_1 = arith.constant 0 : i32
    %c0_i32_2 = arith.constant 0 : i32
    return %arg0, %c0_i32, %c0_i32_0, %c0_i32_1 : i32, i32, i32, i32
  }
}

</mosaic_0001>

<llo_original>
// kernel: tpu_custom_call.1
$region0: #{tpu_custom_call.1}
  #allocation0 [shape = 'u32[]', space=smem, size = 0x4, offset = 0x4, fixed_abs, tag = 'smem constant byte address 0x4 - core index']
  #allocation1 [shape = 'u32[144,128]{1,0:T(1,128)}', space=vmem, size = 0x12000, scoped, tag = 'internal scratch']
  %s0 = inlined_call_operand.hbm [shape: f32[2,3,2,128], index: 0, kind: input, shape index: {}]
  %s1 = inlined_call_operand.hbm [shape: f32[2,3,2,128], index: 1, kind: input, shape index: {}]
  %s2 = inlined_call_operand.vmem [shape: f32[2,2,128], index: 2, kind: input, shape index: {}]
  %s3 = inlined_call_operand.hbm [shape: f32[2,5,2,128], index: 3, kind: output, shape index: {}]
  %s4 = sld [smem:[#allocation0]]
  $region57: #{tpu_custom_call.1} parent=0
    _
  %s6 = ssub.s32 1, %s4
  %s7 = scalar_select 0, %s6, %s4
  $region1: #{tpu_custom_call.1} parent=0
    #allocation2 [shape = 'u8[6144]{0}', space=vmem, size = 0x1800, scoped, tag = 'input window, operand 0']
    #allocation3 [shape = 's32[2]{0}', space=sflag, size = 0x8, scoped, tag = 'scoped memory for tpu_custom_call.1']
    #allocation4 [shape = 's32[2]{0}', space=sflag, size = 0x8, scoped, tag = 'scoped memory for tpu_custom_call.1']
    #allocation5 [shape = 'u8[6144]{0}', space=vmem, size = 0x1800, scoped, tag = 'input window, operand 1']
    #allocation6 [shape = 's32[2]{0}', space=sflag, size = 0x8, scoped, tag = 'scoped memory for tpu_custom_call.1']
    #allocation7 [shape = 'u8[10240]{0}', space=vmem, size = 0x2800, scoped, tag = 'output window, operand 0']
    %8 = vsyncpa [#allocation3], 0
    %s9 = scalar_lea.sflag [#allocation3], 1
    %10 = vsyncpa %s9, 0
    %11 = vsyncpa [#allocation6], 0
    %s12 = scalar_lea.sflag [#allocation6], 1
    %13 = vsyncpa %s12, 0
    %14 = vsyncpa [#allocation4], 0
    %s15 = scalar_lea.sflag [#allocation4], 1
    %16 = vsyncpa %s15, 0
    loop: start=0, step=1, limit=4
    $region2: #{tpu_custom_call.1} parent=1 // loop_pre_header
      _
    $region3: #{tpu_custom_call.1} parent=1 // loop_header
      %s18 = sphi 0, %s22
      %p19 = scmp.ge.s32.totalorder %s18, 4
      %s25 = sphi 0, %s37
      %s26 = sphi 0, %s33
      %s27 = sphi 0, %s25
      %s28 = sphi 0, %s26
      %s29 = sphi 0, %s27
      %s30 = sphi 0, %s28
      %s42 = sphi 0, %s44
      %s45 = sphi 0, %s42
      %s46 = sphi 0, %s45
      %s62 = sphi 0, %s46
      %s70 = sphi 0, %s72
      %s73 = sphi 0, %s70
      %s74 = sphi 0, %s73
      %s90 = sphi 0, %s74
      %s98 = sphi 0, %s100
      %s101 = sphi 0, %s98
      %s102 = sphi 0, %s101
      %s118 = sphi 0, %s102
      %s124 = sphi 0, %s126
      %s127 = sphi 0, %s124
      %s128 = sphi 0, %s127
      %s144 = sphi 0, %s128
    $region4: #{tpu_custom_call.1} parent=1 // loop_header_branch
      %21 = sbr.rel (%p19) target = $region8
    $region5: #{tpu_custom_call.1} parent=1 // loop_body
      %s23 = ssub.s32 %s18, 1
      %s24 = ssub.s32 %s18, 2
      %s31 = sadd.s32 1, %s26
      %p32 = scmp.ge.s32.totalorder %s31, 1
      %s33 = scalar_select %p32, 0, %s31
      %s34 = sadd.s32 1, %s25
      %s35 = scalar_select %p32, %s34, %s25
      %p36 = scmp.ge.s32.totalorder %s35, 2
      %s37 = scalar_select %p36, 0, %s35
      %s38 = ssub.s32 %s25, %s37
      %s39 = ssub.s32 %s26, %s33
      %s40 = sor.u32 %s38, %s39
      %p41 = scmp.eq.s32.totalorder %s40, 0
      %s43 = sadd.s32 %s42, 1
      %s44 = scalar_select %p41, %s42, %s43
      %p47 = pneg %p41
      %p48 = scmp.eq.s32.totalorder %s18, 1
      %p49 = por %p47, %p48
      %p50 = scmp.ne.s32.totalorder %s42, %s45
      %p51 = scmp.eq.s32.totalorder %s18, 0
      %p52 = por %p50, %p51
      %p53 = scmp.ne.s32.totalorder %s42, %s45
      %p54 = scmp.eq.s32.totalorder %s23, 1
      %p55 = por %p53, %p54
      %p56 = scmp.ne.s32.totalorder %s45, %s46
      %p57 = scmp.eq.s32.totalorder %s23, 0
      %p58 = por %p56, %p57
      %p59 = scmp.ne.s32.totalorder %s45, %s46
      %p60 = scmp.eq.s32.totalorder %s24, 1
      %p61 = por %p59, %p60
      %p63 = scmp.ne.s32.totalorder %s46, %s62
      %p64 = scmp.eq.s32.totalorder %s24, 0
      %p65 = por %p63, %p64
      %s66 = ssub.s32 %s25, %s37
      %s67 = ssub.s32 %s26, %s33
      %s68 = sor.u32 %s66, %s67
      %p69 = scmp.eq.s32.totalorder %s68, 0
      %s71 = sadd.s32 %s70, 1
      %s72 = scalar_select %p69, %s70, %s71
      %p75 = pneg %p69
      %p76 = scmp.eq.s32.totalorder %s18, 1
      %p77 = por %p75, %p76
      %p78 = scmp.ne.s32.totalorder %s70, %s73
      %p79 = scmp.eq.s32.totalorder %s18, 0
      %p80 = por %p78, %p79
      %p81 = scmp.ne.s32.totalorder %s70, %s73
      %p82 = scmp.eq.s32.totalorder %s23, 1
      %p83 = por %p81, %p82
      %p84 = scmp.ne.s32.totalorder %s73, %s74
      %p85 = scmp.eq.s32.totalorder %s23, 0
      %p86 = por %p84, %p85
      %p87 = scmp.ne.s32.totalorder %s73, %s74
      %p88 = scmp.eq.s32.totalorder %s24, 1
      %p89 = por %p87, %p88
      %p91 = scmp.ne.s32.totalorder %s74, %s90
      %p92 = scmp.eq.s32.totalorder %s24, 0
      %p93 = por %p91, %p92
      %s94 = ssub.s32 %s25, %s37
      %s95 = ssub.s32 %s26, %s33
      %s96 = sor.u32 %s94, %s95
      %p97 = scmp.eq.s32.totalorder %s96, 0
      %s99 = sadd.s32 %s98, 1
      %s100 = scalar_select %p97, %s98, %s99
      %p103 = pneg %p97
      %p104 = scmp.eq.s32.totalorder %s18, 1
      %p105 = por %p103, %p104
      %p106 = scmp.ne.s32.totalorder %s98, %s101
      %p107 = scmp.eq.s32.totalorder %s18, 0
      %p108 = por %p106, %p107
      %p109 = scmp.ne.s32.totalorder %s98, %s101
      %p110 = scmp.eq.s32.totalorder %s23, 1
      %p111 = por %p109, %p110
      %p112 = scmp.ne.s32.totalorder %s101, %s102
      %p113 = scmp.eq.s32.totalorder %s23, 0
      %p114 = por %p112, %p113
      %p115 = scmp.ne.s32.totalorder %s101, %s102
      %p116 = scmp.eq.s32.totalorder %s24, 1
      %p117 = por %p115, %p116
      %p119 = scmp.ne.s32.totalorder %s102, %s118
      %p120 = scmp.eq.s32.totalorder %s24, 0
      %p121 = por %p119, %p120
      %s122 = ssub.s32 %s25, %s37
      %p123 = scmp.eq.s32.totalorder %s122, 0
      %s125 = sadd.s32 %s124, 1
      %s126 = scalar_select %p123, %s124, %s125
      %p129 = pneg %p123
      %p130 = scmp.eq.s32.totalorder %s18, 1
      %p131 = por %p129, %p130
      %p132 = scmp.ne.s32.totalorder %s124, %s127
      %p133 = scmp.eq.s32.totalorder %s18, 0
      %p134 = por %p132, %p133
      %p135 = scmp.ne.s32.totalorder %s124, %s127
      %p136 = scmp.eq.s32.totalorder %s23, 1
      %p137 = por %p135, %p136
      %p138 = scmp.ne.s32.totalorder %s127, %s128
      %p139 = scmp.eq.s32.totalorder %s23, 0
      %p140 = por %p138, %p139
      %p141 = scmp.ne.s32.totalorder %s127, %s128
      %p142 = scmp.eq.s32.totalorder %s24, 1
      %p143 = por %p141, %p142
      %p145 = scmp.ne.s32.totalorder %s128, %s144
      %p146 = scmp.eq.s32.totalorder %s24, 0
      %p147 = por %p145, %p146
      %p148 = scmp.le.s32.totalorder 1, %s18
      %p149 = scmp.lt.s32.totalorder %s18, 3
      %p150 = pnand %p148, %p149
      %p151 = pneg %p150
      // Predicated region
      $region9: #{tpu_custom_call.1} parent=5 // pred_check
        _
      $region10: #{tpu_custom_call.1} parent=5 // pred_check_branch
        %153 = sbr.rel (%p150) target = $region12
      $region11: #{tpu_custom_call.1} parent=5 // pred_region
        %s154 = ssub.s32 %s18, 1
      $region12: #{tpu_custom_call.1} parent=5 // pred_fallthru
        _
      %p155 = scmp.lt.s32.totalorder %s18, 2
      // Predicated region
      $region13: #{tpu_custom_call.1} parent=5 // pred_check
        %p156 = pneg %p155
      $region14: #{tpu_custom_call.1} parent=5 // pred_check_branch
        %158 = sbr.rel (%p156) target = $region16
      $region15: #{tpu_custom_call.1} parent=5 // pred_region
        // Predicated region
        $region17: #{tpu_custom_call.1} parent=15 // pred_check
          %p159 = pneg %p52
        $region18: #{tpu_custom_call.1} parent=15 // pred_check_branch
          %161 = sbr.rel (%p159) target = $region20
        $region19: #{tpu_custom_call.1} parent=15 // pred_region
          %s162 = sand.u32 %s42, 1
          %s163 = scalar_lea.sflag [#allocation3], %s162
          %s164 = sand.u32 %s42, 1
          %s165 = smul.addr %s164, 6
          %s166 = scalar_lea.vmem [#allocation2], %s165
          %s168 = ssub.s32 96, 96
          %169 = vsyncadd %s163, %s168
          %s170 = smul.addr %s25, 3
          %s171 = sadd.s32 %s26, %s170
          %s172 = smul.addr %s171, 32
          %s173 = scalar_lea.hbm %s0, %s172
          %s174 = sshll.u32 %s166, 4
          %s175 = int_to_ptr.vmem [resolvable:$true] %s174
          %180 = dma.hbm_to_vmem [thread:$0]  %s173, 96, %s175, %s163, 32, 32, 2
        $region20: #{tpu_custom_call.1} parent=15 // pred_fallthru
          _
        // Predicated region
        $region21: #{tpu_custom_call.1} parent=15 // pred_check
          %p181 = pneg %p80
        $region22: #{tpu_custom_call.1} parent=15 // pred_check_branch
          %183 = sbr.rel (%p181) target = $region24
        $region23: #{tpu_custom_call.1} parent=15 // pred_region
          %s184 = sand.u32 %s70, 1
          %s185 = scalar_lea.sflag [#allocation6], %s184
          %s186 = sand.u32 %s70, 1
          %s187 = smul.addr %s186, 6
          %s188 = scalar_lea.vmem [#allocation5], %s187
          %s190 = ssub.s32 96, 96
          %191 = vsyncadd %s185, %s190
          %s192 = smul.addr %s25, 3
          %s193 = sadd.s32 %s26, %s192
          %s194 = smul.addr %s193, 32
          %s195 = scalar_lea.hbm %s1, %s194
          %s196 = sshll.u32 %s188, 4
          %s197 = int_to_ptr.vmem [resolvable:$true] %s196
          %202 = dma.hbm_to_vmem [thread:$0]  %s195, 96, %s197, %s185, 32, 32, 2
        $region24: #{tpu_custom_call.1} parent=15 // pred_fallthru
          _
        // Predicated region
        $region25: #{tpu_custom_call.1} parent=15 // pred_check
          %p203 = pneg %p108
        $region26: #{tpu_custom_call.1} parent=15 // pred_check_branch
          %205 = sbr.rel (%p203) target = $region28
        $region27: #{tpu_custom_call.1} parent=15 // pred_region
          %p206 = scmp.lt.s32.totalorder %s25, 1
          %s207 = scalar_select %p206, %s25, 1
          %p208 = scmp.lt.s32.totalorder %s26, 0
          %s209 = scalar_select %p208, %s26, 0
          %s210 = sadd.s32 %s209, %s207
          %s211 = smul.addr %s210, 2
          %s212 = scalar_lea.vmem %s2, %s211
        $region28: #{tpu_custom_call.1} parent=15 // pred_fallthru
          _
      $region16: #{tpu_custom_call.1} parent=5 // pred_fallthru
        _
      %p213 = scmp.le.s32.totalorder 1, %s18
      %p214 = scmp.lt.s32.totalorder %s18, 3
      %p215 = pnand %p213, %p214
      %p216 = pneg %p215
      // Predicated region
      $region29: #{tpu_custom_call.1} parent=5 // pred_check
        _
      $region30: #{tpu_custom_call.1} parent=5 // pred_check_branch
        %218 = sbr.rel (%p215) target = $region32
      $region31: #{tpu_custom_call.1} parent=5 // pred_region
        %s219 = ssub.s32 %s18, 1
        %s220 = sand.u32 %s45, 1
        %s221 = scalar_lea.sflag [#allocation3], %s220
        %s222 = sand.u32 %s45, 1
        %s223 = smul.addr %s222, 6
        %s224 = scalar_lea.vmem [#allocation2], %s223
        // Predicated region
        $region33: #{tpu_custom_call.1} parent=31 // pred_check
          %p225 = pneg %p58
        $region34: #{tpu_custom_call.1} parent=31 // pred_check_branch
          %227 = sbr.rel (%p225) target = $region36
        $region35: #{tpu_custom_call.1} parent=31 // pred_region
          %228 = dma.done %s221, 96
        $region36: #{tpu_custom_call.1} parent=31 // pred_fallthru
          _
        %s229 = sand.u32 %s73, 1
        %s230 = scalar_lea.sflag [#allocation6], %s229
        %s231 = sand.u32 %s73, 1
        %s232 = smul.addr %s231, 6
        %s233 = scalar_lea.vmem [#allocation5], %s232
        // Predicated region
        $region37: #{tpu_custom_call.1} parent=31 // pred_check
          %p234 = pneg %p86
        $region38: #{tpu_custom_call.1} parent=31 // pred_check_branch
          %236 = sbr.rel (%p234) target = $region40
        $region39: #{tpu_custom_call.1} parent=31 // pred_region
          %237 = dma.done %s230, 96
        $region40: #{tpu_custom_call.1} parent=31 // pred_fallthru
          _
        %s238 = sand.u32 %s45, 1
        %s239 = scalar_lea.sflag [#allocation3], %s238
        %s240 = sand.u32 %s45, 1
        %s241 = smul.addr %s240, 6
        %s242 = scalar_lea.vmem [#allocation2], %s241
        %p243 = pneg %p58
        %p244 = pneg %p55
        %s245 = sand.u32 %s73, 1
        %s246 = scalar_lea.sflag [#allocation6], %s245
        %s247 = sand.u32 %s73, 1
        %s248 = smul.addr %s247, 6
        %s249 = scalar_lea.vmem [#allocation5], %s248
        %p250 = pneg %p86
        %p251 = pneg %p83
        %p252 = scmp.lt.s32.totalorder %s27, 1
        %s253 = scalar_select %p252, %s27, 1
        %p254 = scmp.lt.s32.totalorder %s28, 0
        %s255 = scalar_select %p254, %s28, 0
        %s256 = sadd.s32 %s255, %s253
        %s257 = smul.addr %s256, 2
        %s258 = scalar_lea.vmem %s2, %s257
        %p259 = pneg %p114
        %p260 = pneg %p111
        %p261 = pneg %p140
        %p262 = pneg %p137
        %s263 = sand.u32 %s127, 1
        %s264 = scalar_lea.sflag [#allocation4], %s263
        %s265 = sand.u32 %s127, 1
        %s266 = smul.addr %s265, 10
        %s267 = scalar_lea.vmem [#allocation7], %s266
        %p268 = scmp.lt.s32.totalorder %s27, 1
        %s269 = scalar_select %p268, %s27, 1
        %p270 = scmp.lt.s32.totalorder %s28, 0
        %s271 = scalar_select %p270, %s28, 0
        %s272 = sadd.s32 %s271, %s269
        %s273 = smul.addr %s272, 2
        %s274 = scalar_lea.vmem %s2, %s273
        %p275 = scmp.eq.s32.totalorder %s28, 0
        // Predicated region
        $region41: #{tpu_custom_call.1} parent=31 // pred_check
          %p276 = pneg %p275
        $region42: #{tpu_custom_call.1} parent=31 // pred_check_branch
          %278 = sbr.rel (%p276) target = $region44
        $region43: #{tpu_custom_call.1} parent=31 // pred_region
          %279 = vst [vmem:[%s267] sm:$0x3] 0.0
          %280 = vst [vmem:[%s267 + $0x2] sm:$0x3] 0.0
          %281 = vst [vmem:[%s267 + $0x4] sm:$0x3] 0.0
          %282 = vst [vmem:[%s267 + $0x6] sm:$0x3] 0.0
          %283 = vst [vmem:[%s267 + $0x8] sm:$0x3] 0.0
        $region44: #{tpu_custom_call.1} parent=31 // pred_fallthru
          _
        %v284 = vld [vmem:[%s224] sm:$0x3]
        %v285 = vld [vmem:[%s224 + $0x2] sm:$0x3]
        %v286 = vld [vmem:[%s224 + $0x4] sm:$0x3]
        %v287 = vld [vmem:[%s233] sm:$0x3]
        %v288 = vld [vmem:[%s233 + $0x2] sm:$0x3]
        %v289 = vld [vmem:[%s233 + $0x4] sm:$0x3]
        %v290 = vld [vmem:[%s274] sm:$0x3]
        %v291 = vsub.f32 %v284, %v287
        %v292 = vsub.f32 %v285, %v288
        %v293 = vsub.f32 %v286, %v289
        %v294 = vmax.f32 %v284, 0.0
        %v295 = vmax.f32 %v285, 0.0
        %v296 = vmax.f32 %v286, 0.0
        %v297 = vmin.f32 %v294, 1.0
        %v298 = vmin.f32 %v295, 1.0
        %v299 = vmin.f32 %v296, 1.0
        %v300 = vsub.f32 %v297, %v287
        %v301 = vsub.f32 %v298, %v288
        %v302 = vsub.f32 %v299, %v289
        %v303 = vmul.f32 %v300, %v290
        %v304 = vmul.f32 %v301, %v290
        %v305 = vmul.f32 %v302, %v290
        %v306 = vsub.f32 %v300, %v303
        %v307 = vsub.f32 %v301, %v304
        %v308 = vsub.f32 %v302, %v305
        %v309 = vld [vmem:[%s267] sm:$0x3]
        %v310 = vmul.f32 %v291, %v291
        %v311 = vmul.f32 %v292, %v292
        %v312 = vmul.f32 %v293, %v293
        %vm313 = vcmask 1041408
        %v314 = vsel %vm313, %v310, 0.0
        %v315 = vsel %vm313, %v311, 0.0
        %v316 = vadd.f32 %v314, %v315
        %v317 = vsel %vm313, %v312, 0.0
        %v318 = vadd.f32 %v316, %v317
        %v319 = vadd.f32 %v309, %v318
        %320 = vst [vmem:[%s267] sm:$0x3] %v319
        %s321 = scalar_lea.vmem %s267, 2 [#allocation7]
        %v322 = vld [vmem:[%s321] sm:$0x3]
        %v323 = vmul.f32 %v300, %v300
        %v324 = vmul.f32 %v301, %v301
        %v325 = vmul.f32 %v302, %v302
        %v326 = vsel %vm313, %v323, 0.0
        %v327 = vsel %vm313, %v324, 0.0
        %v328 = vadd.f32 %v326, %v327
        %v329 = vsel %vm313, %v325, 0.0
        %v330 = vadd.f32 %v328, %v329
        %v331 = vadd.f32 %v322, %v330
        %332 = vst [vmem:[%s321] sm:$0x3] %v331
        %s333 = scalar_lea.vmem %s267, 4 [#allocation7]
        %v334 = vld [vmem:[%s333] sm:$0x3]
        %v335 = vmul.f32 %v303, %v303
        %v336 = vmul.f32 %v304, %v304
        %v337 = vmul.f32 %v305, %v305
        %v338 = vsel %vm313, %v335, 0.0
        %v339 = vsel %vm313, %v336, 0.0
        %v340 = vadd.f32 %v338, %v339
        %v341 = vsel %vm313, %v337, 0.0
        %v342 = vadd.f32 %v340, %v341
        %v343 = vadd.f32 %v334, %v342
        %344 = vst [vmem:[%s333] sm:$0x3] %v343
        %s345 = scalar_lea.vmem %s267, 6 [#allocation7]
        %v346 = vld [vmem:[%s345] sm:$0x3]
        %v347 = vmul.f32 %v306, %v306
        %v348 = vmul.f32 %v307, %v307
        %v349 = vmul.f32 %v308, %v308
        %v350 = vsel %vm313, %v347, 0.0
        %v351 = vsel %vm313, %v348, 0.0
        %v352 = vadd.f32 %v350, %v351
        %v353 = vsel %vm313, %v349, 0.0
        %v354 = vadd.f32 %v352, %v353
        %v355 = vadd.f32 %v346, %v354
        %356 = vst [vmem:[%s345] sm:$0x3] %v355
        %s357 = scalar_lea.vmem %s267, 8 [#allocation7]
        %v358 = vld [vmem:[%s357] sm:$0x3]
        %v359 = vadd.f32 %v358, %v290
        %360 = vst [vmem:[%s357] sm:$0x3] %v359
        %s361 = sand.u32 %s127, 1
        %s362 = scalar_lea.sflag [#allocation4], %s361
        %s363 = sand.u32 %s127, 1
        %s364 = smul.addr %s363, 10
        %s365 = scalar_lea.vmem [#allocation7], %s364
        // Predicated region
        $region45: #{tpu_custom_call.1} parent=31 // pred_check
          %p366 = pneg %p137
        $region46: #{tpu_custom_call.1} parent=31 // pred_check_branch
          %368 = sbr.rel (%p366) target = $region48
        $region47: #{tpu_custom_call.1} parent=31 // pred_region
          %s370 = ssub.s32 160, 160
          %371 = vsyncadd %s362, %s370
          %s372 = smul.addr %s27, 5
          %s373 = smul.addr %s372, 32
          %s374 = scalar_lea.hbm %s3, %s373
          %s375 = sshll.u32 %s365, 4
          %s376 = int_to_ptr.vmem [resolvable:$true] %s375
          %381 = dma.vmem_to_hbm [thread:$0]  %s376, 160, %s374, %s362, 32, 32, 2
        $region48: #{tpu_custom_call.1} parent=31 // pred_fallthru
          _
      $region32: #{tpu_custom_call.1} parent=5 // pred_fallthru
        _
      %p382 = scmp.le.s32.totalorder 2, %s18
      // Predicated region
      $region49: #{tpu_custom_call.1} parent=5 // pred_check
        %p383 = pneg %p382
      $region50: #{tpu_custom_call.1} parent=5 // pred_check_branch
        %385 = sbr.rel (%p383) target = $region52
      $region51: #{tpu_custom_call.1} parent=5 // pred_region
        %s386 = ssub.s32 %s18, 2
        // Predicated region
        $region53: #{tpu_custom_call.1} parent=51 // pred_check
          %p387 = pneg %p143
        $region54: #{tpu_custom_call.1} parent=51 // pred_check_branch
          %389 = sbr.rel (%p387) target = $region56
        $region55: #{tpu_custom_call.1} parent=51 // pred_region
          %s390 = sand.u32 %s128, 1
          %s391 = scalar_lea.sflag [#allocation4], %s390
          %s392 = sand.u32 %s128, 1
          %s393 = smul.addr %s392, 10
          %s394 = scalar_lea.vmem [#allocation7], %s393
          %395 = dma.done %s391, 160
        $region56: #{tpu_custom_call.1} parent=51 // pred_fallthru
          _
      $region52: #{tpu_custom_call.1} parent=5 // pred_fallthru
        _
    $region6: #{tpu_custom_call.1} parent=1 // loop_footer
      %s22 = sadd.s32 1, %s18
    $region7: #{tpu_custom_call.1} parent=1 // loop_footer_branch
      %17 = sbr.rel target = $region3
    $region8: #{tpu_custom_call.1} parent=1 // loop_exit
      _
    %396 = vsyncpa [#allocation3], 1
    %s397 = scalar_lea.sflag [#allocation3], 1
    %398 = vsyncpa %s397, 1
    %399 = vsyncpa [#allocation6], 1
    %s400 = scalar_lea.sflag [#allocation6], 1
    %401 = vsyncpa %s400, 1
    %402 = vsyncpa [#allocation4], 1
    %s403 = scalar_lea.sflag [#allocation4], 1
    %404 = vsyncpa %s403, 1

</llo_original>
